<compile_context>
chip_gen: v7x
topology: tpu7x:2x2x1
jax: 0.10.0
libtpu: 0.0.40
codegen_flags: <defaults>
</compile_context>

<pallas_src>
import functools

import jax
import jax.numpy as jnp
from jax.experimental import pallas as pl
from jax.experimental.pallas import tpu as pltpu


_VMEM_BUDGET = 40 * (1 << 20)   # conservative: fits v7x's 64 MiB physical VMEM


def _choose_tile_l(L: int) -> int:
    """Largest token tile <= 256 dividing L (multiple of 8 when actually tiling)."""
    if L <= 256:
        return L
    for t in range(256, 7, -8):
        if L % t == 0:
            return t
    # No multiple-of-8 divisor <= 256 (e.g. L = 289).  A non-multiple-of-8 tile
    # would violate the (8, 128) sublane rule, so keep the full axis; the VMEM
    # planner below shrinks TB / switches paths or raises a clear error instead
    # of silently blowing the VMEM budget.
    return L


def _plan_tiling(B, L, D, E, out_bytes, force_split):
    """Pick (tile_l, nt, TB, resident_out, vmem_need) under the VMEM budget."""
    tile_l = _choose_tile_l(L)
    nt = L // tile_l
    # Constant operands (bf16 weight, f32 pos+bias table, f32 cls row).  Counted
    # at 2x even though single buffering is requested -> conservative.
    const_bytes = 2 * (D * E * 2 + L * E * 4 + E * 4)
    tb_candidates = [t for t in (8, 4, 2, 1) if B % t == 0]
    if not force_split:
        for tb in tb_candidates:
            need = (const_bytes
                    + 2 * tb * tile_l * D * 2             # patches, bf16, dbl-buffered
                    + 2 * tb * (L + 1) * E * out_bytes)   # resident out, dbl-buffered
            if need <= _VMEM_BUDGET:
                return tile_l, nt, tb, True, need
    for tb in tb_candidates:
        need = (const_bytes
                + 2 * tb * tile_l * D * 2
                + 2 * tb * tile_l * E * out_bytes)        # tiled out block
        if need <= _VMEM_BUDGET:
            return tile_l, nt, tb, False, need
    # TODO(synk): pad L to a multiple-of-8 tile (masked last tile) for exotic
    # shapes where even the split path with TB=1 exceeds the budget.
    raise ValueError(
        f"patch_embedding: no tiling fits {_VMEM_BUDGET >> 20} MiB VMEM "
        f"(L={L}, D={D}, E={E}, out_bytes={out_bytes})")


def _constant_block_spec(block_shape, index_map):
    """BlockSpec for a constant-index operand; single-buffered when supported."""
    buffered = getattr(pl, "Buffered", None)
    if buffered is not None:
        try:
            return pl.BlockSpec(block_shape, index_map, pipeline_mode=buffered(1))
        except TypeError:
            pass
    return pl.BlockSpec(block_shape, index_map)


def _patch_embed_kernel_resident(patches_ref, w_ref, add_ref, row0_ref, out_ref, *, nt):
    # patches_ref: (TB, tile_l, D) bf16      w_ref:  (D, E) bf16
    # add_ref:     (L, E) f32  (resident; = pos[1:] + bias)
    # row0_ref:    (1, E) f32  (= cls + pos[0])
    # out_ref:     (TB, L+1, E), VMEM-resident across the token-tile axis,
    #              written back to HBM once per batch block.
    tb, tile_l, d = patches_ref.shape
    e = w_ref.shape[1]

    # Single MXU call for all TB images in the block (f32 accumulation).
    y = jnp.dot(patches_ref[...].reshape(tb * tile_l, d), w_ref[...],
                preferred_element_type=jnp.float32)

    if nt == 1:
        add = add_ref[...]
    else:
        start = pl.multiple_of(pl.program_id(1) * tile_l, tile_l)
        add = add_ref[pl.ds(start, tile_l), :]
    y = (y.reshape(tb, tile_l, e) + add[None, :, :]).astype(out_ref.dtype)

    cls_row = jnp.broadcast_to(row0_ref[...].astype(out_ref.dtype), (tb, 1, e))

    if nt == 1:
        # Single token tile: static slices only.
        out_ref[:, 0:1, :] = cls_row
        out_ref[:, 1:, :] = y
    else:
        l = pl.program_id(1)

        @pl.when(l == 0)
        def _():
            out_ref[:, 0:1, :] = cls_row

        # TODO(synk): the +1 sublane offset costs an XLU rotation per tile when
        # nt > 1; it is hidden under HBM stalls here, and the split path below
        # removes it entirely for the large-L shapes where it could surface.
        out_ref[:, pl.ds(l * tile_l + 1, tile_l), :] = y


def _patch_embed_kernel_split(patches_ref, w_ref, add_ref, out_ref, *, nt):
    # Split-output path: out_ref is an aligned (TB, tile_l, E) block of a
    # (B, L, E) patch-token output; the cls row is handled in the wrapper.
    tb, tile_l, d = patches_ref.shape
    e = w_ref.shape[1]
    y = jnp.dot(patches_ref[...].reshape(tb * tile_l, d), w_ref[...],
                preferred_element_type=jnp.float32)
    if nt == 1:
        add = add_ref[...]
    else:
        start = pl.multiple_of(pl.program_id(1) * tile_l, tile_l)
        add = add_ref[pl.ds(start, tile_l), :]
    out_ref[...] = (y.reshape(tb, tile_l, e) + add[None, :, :]).astype(out_ref.dtype)


def patch_embedding_forward(x, w_t, bias, cls_token, pos_embedding, *,
                            patch_size, out_dtype=None, force_split=False):
    """x: (B, C, H, W) NCHW.  w_t: (D, E) = linear.weight.T, bias: (E,),
    cls_token: (1, 1, E), pos_embedding: (1, L+1, E).  Returns (B, L+1, E).

    out_dtype=None keeps the module semantics (x.dtype); pass jnp.bfloat16 when
    the downstream transformer runs in bf16 (halves the writeback stream)."""
    B, C, H, W = x.shape
    P = patch_size
    assert H % P == 0 and W % P == 0, "Image dimensions must be divisible by patch size"
    assert H == W, "Image must be square"
    Hp, Wp = H // P, W // P
    L = Hp * Wp
    D = C * P * P
    E = w_t.shape[1]

    out_dtype = x.dtype if out_dtype is None else jnp.dtype(out_dtype)
    out_bytes = jnp.dtype(out_dtype).itemsize

    # torch.nn.Unfold(kernel_size=P, stride=P).transpose(1, 2):
    # columns ordered (c, kh, kw); patch index row-major over (hp, wp).
    # Pure reshape/transpose/cast so XLA can fuse it into the pallas_call
    # operand fetch (allow_input_fusion); at worst it materializes one dense
    # bf16 copy (half of x's f32 byte count).
    patches = (
        x.reshape(B, C, Hp, P, Wp, P)
         .transpose(0, 2, 4, 1, 3, 5)
         .reshape(B, L, D)
         .astype(jnp.bfloat16)
    )
    w16 = w_t.astype(jnp.bfloat16)

    pos2d = pos_embedding.reshape(L + 1, E).astype(jnp.float32)
    add_patches = pos2d[1:, :] + bias.astype(jnp.float32)[None, :]   # (L, E)
    row0 = cls_token.reshape(1, E).astype(jnp.float32) + pos2d[0:1, :]  # (1, E)

    tile_l, nt, tb, resident, vmem_need = _plan_tiling(B, L, D, E, out_bytes, force_split)
    vmem_limit = int(max(32 << 20, min((vmem_need * 5) // 4 + (4 << 20), 56 << 20)))
    grid = (B // tb, nt)

    cost = pl.CostEstimate(
        flops=2 * B * L * D * E,
        transcendentals=0,
        bytes_accessed=(B * L * D * 2 + D * E * 2 + L * E * 4 + E * 4
                        + B * (L + 1) * E * out_bytes),
    )

    if resident:
        kernel = functools.partial(_patch_embed_kernel_resident, nt=nt)
        return pl.pallas_call(
            kernel,
            out_shape=jax.ShapeDtypeStruct((B, L + 1, E), out_dtype),
            grid_spec=pltpu.PrefetchScalarGridSpec(
                num_scalar_prefetch=0,
                grid=grid,
                in_specs=[
                    pl.BlockSpec((tb, tile_l, D), lambda b, l: (b, l, 0)),
                    _constant_block_spec((D, E), lambda b, l: (0, 0)),
                    _constant_block_spec((L, E), lambda b, l: (0, 0)),
                    _constant_block_spec((1, E), lambda b, l: (0, 0)),
                ],
                out_specs=pl.BlockSpec((tb, L + 1, E), lambda b, l: (b, 0, 0)),
            ),
            compiler_params=pltpu.CompilerParams(
                dimension_semantics=("parallel", "arbitrary"),
                vmem_limit_bytes=vmem_limit,
                allow_input_fusion=[True, False, False, False],
            ),
            cost_estimate=cost,
        )(patches, w16, add_patches, row0)

    # Split path (resident output block would not fit VMEM, e.g. high-res ViT on
    # v7x): aligned patch-token output, cls row computed outside (x-independent).
    kernel = functools.partial(_patch_embed_kernel_split, nt=nt)
    patch_out = pl.pallas_call(
        kernel,
        out_shape=jax.ShapeDtypeStruct((B, L, E), out_dtype),
        grid_spec=pltpu.PrefetchScalarGridSpec(
            num_scalar_prefetch=0,
            grid=grid,
            in_specs=[
                pl.BlockSpec((tb, tile_l, D), lambda b, l: (b, l, 0)),
                _constant_block_spec((D, E), lambda b, l: (0, 0)),
                _constant_block_spec((L, E), lambda b, l: (0, 0)),
            ],
            out_specs=pl.BlockSpec((tb, tile_l, E), lambda b, l: (b, l, 0)),
        ),
        compiler_params=pltpu.CompilerParams(
            dimension_semantics=("parallel", "parallel"),
            vmem_limit_bytes=vmem_limit,
            allow_input_fusion=[True, False, False],
        ),
        cost_estimate=cost,
    )(patches, w16, add_patches)
    cls_rows = jnp.broadcast_to(row0.astype(out_dtype)[None, :, :], (B, 1, E))
    return jnp.concatenate([cls_rows, patch_out], axis=1)


def patch_embedding_reference(x, w_t, bias, cls_token, pos_embedding, patch_size):
    """Pure-JAX reference using the same bf16-input / f32-accumulate recipe."""
    B, C, H, W = x.shape
    P = patch_size
    Hp, Wp = H // P, W // P
    L = Hp * Wp
    E = w_t.shape[1]
    patches = (
        x.reshape(B, C, Hp, P, Wp, P)
         .transpose(0, 2, 4, 1, 3, 5)
         .reshape(B, L, C * P * P)
         .astype(jnp.bfloat16)
    )
    y = jax.lax.dot_general(
        patches, w_t.astype(jnp.bfloat16),
        dimension_numbers=(((2,), (0,)), ((), ())),
        preferred_element_type=jnp.float32,
    )
    y = y + (pos_embedding[0, 1:, :] + bias[None, :])[None, :, :]
    row0 = cls_token[0, 0, :] + pos_embedding[0, 0, :]
    row0 = jnp.broadcast_to(row0[None, None, :], (B, 1, E))
    return jnp.concatenate([row0, y], axis=1).astype(x.dtype)


if __name__ == "__main__":
    # Small shapes consistent with the module's forward.
    B, C, H, W = 2, 4, 16, 16
    patch_size = 4
    embed_dim = 32
    L = (H // patch_size) * (W // patch_size)      # 16 patches
    D = C * patch_size * patch_size                # 64 patch dim

    key = jax.random.PRNGKey(0)
    kx, kw, kb, kc, kp = jax.random.split(key, 5)

    x = jax.random.normal(kx, (B, C, H, W), dtype=jnp.float32)
    # nn.Linear(D, embed_dim): weight (E, D), bias (E,). Pass transposed weight.
    w = jax.random.normal(kw, (embed_dim, D), dtype=jnp.float32) * 0.05
    w_t = w.T
    bias = jax.random.normal(kb, (embed_dim,), dtype=jnp.float32) * 0.05
    cls_token = jax.random.normal(kc, (1, 1, embed_dim), dtype=jnp.float32)
    pos_embedding = jax.random.normal(kp, (1, L + 1, embed_dim), dtype=jnp.float32)

    fwd = jax.jit(patch_embedding_forward,
                  static_argnames=("patch_size", "out_dtype", "force_split"))
    ref = patch_embedding_reference(x, w_t, bias, cls_token, pos_embedding, patch_size)

    # 1) Default path: resident (TB, L+1, E) output, f32 output (module semantics).
    out = jax.block_until_ready(
        fwd(x, w_t, bias, cls_token, pos_embedding, patch_size=patch_size))
    assert out.shape == (B, L + 1, embed_dim), out.shape
    assert out.dtype == x.dtype, out.dtype
    err = float(jnp.max(jnp.abs(out - ref)))
    assert jnp.allclose(out, ref, atol=2e-3, rtol=2e-3), err

    # 2) Split-output fallback (the path used when the resident output block
    #    would not fit v7x VMEM for high-resolution ViT shapes).
    out_split = jax.block_until_ready(
        fwd(x, w_t, bias, cls_token, pos_embedding, patch_size=patch_size,
            force_split=True))
    err = float(jnp.max(jnp.abs(out_split - ref)))
    assert jnp.allclose(out_split, ref, atol=2e-3, rtol=2e-3), err

    # 3) bf16 output (halves the dominant HBM writeback stream).
    out_bf16 = jax.block_until_ready(
        fwd(x, w_t, bias, cls_token, pos_embedding, patch_size=patch_size,
            out_dtype=jnp.bfloat16))
    assert out_bf16.dtype == jnp.bfloat16
    err = float(jnp.max(jnp.abs(out_bf16.astype(jnp.float32) - ref)))
    assert err < 3e-2, err

    print("KERNEL_OK")
</pallas_src>

<mosaic_0001>
module attributes {stable_mosaic.version = 11 : i64} {
  func.func @_patch_embed_kernel_resident(%arg0: i32, %arg1: i32, %arg2: memref<2x16x64xbf16, #tpu.memory_space<vmem>>, %arg3: memref<64x32xbf16, #tpu.memory_space<vmem>>, %arg4: memref<16x32xf32, #tpu.memory_space<vmem>>, %arg5: memref<1x32xf32, #tpu.memory_space<vmem>>, %arg6: memref<2x17x32xf32, #tpu.memory_space<vmem>>) attributes {dimension_semantics = [#tpu.dimension_semantics<parallel>, #tpu.dimension_semantics<arbitrary>], iteration_bounds = array<i64: 1, 1>, scalar_prefetch = 0 : i64, scratch_operands = 0 : i64, tpu.core_type = #tpu.core_type<tc>, window_params = [{transform_indices = @transform_0, window_bounds = array<i64: 2, 16, 64>}, {pipeline_mode = #tpu.pipeline_mode<synchronous>, transform_indices = @transform_1, window_bounds = array<i64: 64, 32>}, {pipeline_mode = #tpu.pipeline_mode<synchronous>, transform_indices = @transform_2, window_bounds = array<i64: 16, 32>}, {pipeline_mode = #tpu.pipeline_mode<synchronous>, transform_indices = @transform_3, window_bounds = array<i64: 1, 32>}, {transform_indices = @transform_4, window_bounds = array<i64: 2, 17, 32>}]} {
    %c0 = arith.constant 0 : index
    %c0_0 = arith.constant 0 : index
    %c0_1 = arith.constant 0 : index
    %0 = vector.load %arg2[%c0, %c0_0, %c0_1] : memref<2x16x64xbf16, #tpu.memory_space<vmem>>, vector<2x16x64xbf16>
    %1 = vector.shape_cast %0 : vector<2x16x64xbf16> to vector<32x64xbf16>
    %c0_2 = arith.constant 0 : index
    %c0_3 = arith.constant 0 : index
    %2 = vector.load %arg3[%c0_2, %c0_3] : memref<64x32xbf16, #tpu.memory_space<vmem>>, vector<64x32xbf16>
    %cst = arith.constant dense<0.000000e+00> : vector<32x32xf32>
    %3 = tpu.matmul %1, %2, %cst {dimension_numbers = #tpu.dot_dimension_numbers<[1], [0], [0], [1], [0, 0, 1, 1], [], []>} : vector<32x64xbf16>, vector<64x32xbf16>, vector<32x32xf32> -> vector<32x32xf32>
    %c0_4 = arith.constant 0 : index
    %c0_5 = arith.constant 0 : index
    %4 = vector.load %arg4[%c0_4, %c0_5] : memref<16x32xf32, #tpu.memory_space<vmem>>, vector<16x32xf32>
    %5 = vector.shape_cast %3 : vector<32x32xf32> to vector<2x16x32xf32>
    %6 = vector.shape_cast %4 : vector<16x32xf32> to vector<1x16x32xf32>
    %7 = vector.broadcast %6 : vector<1x16x32xf32> to vector<2x16x32xf32>
    %8 = arith.addf %5, %7 : vector<2x16x32xf32>
    %c0_6 = arith.constant 0 : index
    %c0_7 = arith.constant 0 : index
    %9 = vector.load %arg5[%c0_6, %c0_7] : memref<1x32xf32, #tpu.memory_space<vmem>>, vector<1x32xf32>
    %10 = vector.shape_cast %9 : vector<1x32xf32> to vector<1x1x32xf32>
    %11 = vector.broadcast %10 : vector<1x1x32xf32> to vector<2x1x32xf32>
    %c0_8 = arith.constant 0 : index
    %c0_9 = arith.constant 0 : index
    %c0_10 = arith.constant 0 : index
    %12 = vector.load %arg6[%c0_8, %c0_9, %c0_10] : memref<2x17x32xf32, #tpu.memory_space<vmem>>, vector<2x1x32xf32>
    tpu.vector_store %arg6[%c0_8, %c0_9, %c0_10], %11 {strides = array<i32>} : memref<2x17x32xf32, #tpu.memory_space<vmem>>, vector<2x1x32xf32>,
    %c0_11 = arith.constant 0 : index
    %c1 = arith.constant 1 : index
    %c0_12 = arith.constant 0 : index
    %13 = vector.load %arg6[%c0_11, %c1, %c0_12] : memref<2x17x32xf32, #tpu.memory_space<vmem>>, vector<2x16x32xf32>
    tpu.vector_store %arg6[%c0_11, %c1, %c0_12], %8 {strides = array<i32>} : memref<2x17x32xf32, #tpu.memory_space<vmem>>, vector<2x16x32xf32>,
    return
  }
  func.func @transform_0(%arg0: i32, %arg1: i32) -> (i32, i32, i32) {
    %c0_i32 = arith.constant 0 : i32
    %c0_i32_0 = arith.constant 0 : i32
    return %arg0, %arg1, %c0_i32 : i32, i32, i32
  }
  func.func @transform_1(%arg0: i32, %arg1: i32) -> (i32, i32) {
    %c0_i32 = arith.constant 0 : i32
    %c0_i32_0 = arith.constant 0 : i32
    %c0_i32_1 = arith.constant 0 : i32
    return %c0_i32, %c0_i32_0 : i32, i32
  }
  func.func @transform_2(%arg0: i32, %arg1: i32) -> (i32, i32) {
    %c0_i32 = arith.constant 0 : i32
    %c0_i32_0 = arith.constant 0 : i32
    %c0_i32_1 = arith.constant 0 : i32
    return %c0_i32, %c0_i32_0 : i32, i32
  }
  func.func @transform_3(%arg0: i32, %arg1: i32) -> (i32, i32) {
    %c0_i32 = arith.constant 0 : i32
    %c0_i32_0 = arith.constant 0 : i32
    %c0_i32_1 = arith.constant 0 : i32
    return %c0_i32, %c0_i32_0 : i32, i32
  }
  func.func @transform_4(%arg0: i32, %arg1: i32) -> (i32, i32, i32) {
    %c0_i32 = arith.constant 0 : i32
    %c0_i32_0 = arith.constant 0 : i32
    %c0_i32_1 = arith.constant 0 : i32
    return %arg0, %c0_i32, %c0_i32_0 : i32, i32, i32
  }
}

</mosaic_0001>

<llo_original>
// kernel: patch_embedding_forward.1
$region0: #{patch_embedding_forward.1}
  #allocation0 [shape = 'u32[]', space=smem, size = 0x4, offset = 0x4, fixed_abs, tag = 'smem constant byte address 0x4 - core index']
  #allocation1 [shape = 'u32[144,128]{1,0:T(1,128)}', space=vmem, size = 0x12000, scoped, tag = 'internal scratch']
  %s0 = inlined_call_operand.vmem [shape: bf16[2,16,64], index: 0, kind: input, shape index: {}]
  %s1 = inlined_call_operand.vmem [shape: bf16[64,32], index: 1, kind: input, shape index: {}]
  %s2 = inlined_call_operand.vmem [shape: f32[16,32], index: 2, kind: input, shape index: {}]
  %s3 = inlined_call_operand.vmem [shape: f32[1,32], index: 3, kind: input, shape index: {}]
  %s4 = inlined_call_operand.vmem [shape: f32[2,17,32], index: 4, kind: output, shape index: {}]
  %s5 = sld [smem:[#allocation0]]
  $region26: #{patch_embedding_forward.1} parent=0
    _
  %s7 = ssub.s32 1, %s5
  %s8 = scalar_select 0, %s7, %s5
  // Predicated region
  $region2: #{patch_embedding_forward.1} parent=0 // pred_check
    _
  $region3: #{patch_embedding_forward.1} parent=0 // pred_check_branch
    %10 = sbr.rel (0) target = $region5
  $region4: #{patch_embedding_forward.1} parent=0 // pred_region
    _
  $region5: #{patch_embedding_forward.1} parent=0 // pred_fallthru
    _
  // Predicated region
  $region6: #{patch_embedding_forward.1} parent=0 // pred_check
    _
  $region7: #{patch_embedding_forward.1} parent=0 // pred_check_branch
    %12 = sbr.rel (0) target = $region9
  $region8: #{patch_embedding_forward.1} parent=0 // pred_region
    _
  $region9: #{patch_embedding_forward.1} parent=0 // pred_fallthru
    _
  // Predicated region
  $region10: #{patch_embedding_forward.1} parent=0 // pred_check
    _
  $region11: #{patch_embedding_forward.1} parent=0 // pred_check_branch
    %14 = sbr.rel (0) target = $region13
  $region12: #{patch_embedding_forward.1} parent=0 // pred_region
    _
  $region13: #{patch_embedding_forward.1} parent=0 // pred_fallthru
    _
  // Predicated region
  $region14: #{patch_embedding_forward.1} parent=0 // pred_check
    _
  $region15: #{patch_embedding_forward.1} parent=0 // pred_check_branch
    %16 = sbr.rel (0) target = $region17
  $region16: #{patch_embedding_forward.1} parent=0 // pred_region
    _
  $region17: #{patch_embedding_forward.1} parent=0 // pred_fallthru
    _
  %v18 = vld [vmem:[%s0] sm:$0xf]
  %v19 = vld [vmem:[%s0 + $0x4] sm:$0xf]
  %v20 = vld [vmem:[%s0 + $0x8] sm:$0xf]
  %v21 = vld [vmem:[%s0 + $0xc] sm:$0xf]
  %v22 = vld [vmem:[%s1] sm:$0xf]
  %v23 = vld [vmem:[%s1 + $0x4] sm:$0xf]
  %v24 = vld [vmem:[%s1 + $0x8] sm:$0xf]
  %v25 = vld [vmem:[%s1 + $0xc] sm:$0xf]
  %v26 = vld [vmem:[%s1 + $0x10] sm:$0xf]
  %v27 = vld [vmem:[%s1 + $0x14] sm:$0xf]
  %v28 = vld [vmem:[%s1 + $0x18] sm:$0xf]
  %v29 = vld [vmem:[%s1 + $0x1c] sm:$0xf]
  %v34 = vunpack.c.l.b16 %v18
  %v35 = vunpack.c.l.b16 %v19
  %v36 = vunpack.c.l.b16 %v20
  %v37 = vunpack.c.l.b16 %v21
  %v38 = vpack.c.b16 %v35, %v34
  %v39 = vpack.c.b16 %v37, %v36
  %v48 = vunpack.c.l.b16 %v22
  %v49 = vunpack.c.l.b16 %v23
  %v50 = vunpack.c.l.b16 %v24
  %v51 = vunpack.c.l.b16 %v25
  %v52 = vunpack.c.l.b16 %v26
  %v53 = vunpack.c.l.b16 %v27
  %v54 = vunpack.c.l.b16 %v28
  %v55 = vunpack.c.l.b16 %v29
  %v56 = vpack.c.b16 %v49, %v48
  %v57 = vpack.c.b16 %v51, %v50
  %v58 = vpack.c.b16 %v53, %v52
  %v59 = vpack.c.b16 %v55, %v54
  %vm64 = vcmask 523264
  %v66 = vsel %vm64, %v38, 0
  %v69 = vsel %vm64, %v39, 0
  %71 = vmatprep.subr.bf16.mxu0 0
  %72 = vmatpush1.bf16.msra.mxu0 %v56
  %73 = vmatprep.subr.bf16.mxu0 0
  %74 = vmatpush1.bf16.msra.mxu0 %v57
  %75 = vmatprep.subr.bf16.mxu0 0
  %76 = vmatpush1.bf16.msra.mxu0 %v58
  %77 = vmatprep.subr.bf16.mxu0 0
  %78 = vmatpush1.bf16.msra.mxu0 %v59
  %79 = vmatprep.subr.bf16.mxu0 0
  %80 = vmatpush1.bf16.msra.mxu0 0
  %81 = vmatprep.subr.bf16.mxu0 0
  %82 = vmatpush1.bf16.msra.mxu0 0
  %83 = vmatprep.subr.bf16.mxu0 0
  %84 = vmatpush1.bf16.msra.mxu0 0
  %85 = vmatprep.subr.bf16.mxu0 0
  %86 = vmatpush1.bf16.msra.mxu0 0
  %87 = vmatprep.subr.bf16.mxu0 0
  %88 = vmatpush1.bf16.msra.mxu0 0
  %89 = vmatprep.subr.bf16.mxu0 0
  %90 = vmatpush1.bf16.msra.mxu0 0
  %91 = vmatprep.subr.bf16.mxu0 0
  %92 = vmatpush1.bf16.msra.mxu0 0
  %93 = vmatprep.subr.bf16.mxu0 0
  %94 = vmatpush1.bf16.msra.mxu0 0
  %95 = vmatprep.subr.bf16.mxu0 0
  %96 = vmatpush1.bf16.msra.mxu0 0
  %97 = vmatprep.subr.bf16.mxu0 0
  %98 = vmatpush1.bf16.msra.mxu0 0
  %99 = vmatprep.subr.bf16.mxu0 0
  %100 = vmatpush1.bf16.msra.mxu0 0
  %101 = vmatprep.subr.bf16.mxu0 0
  %102 = vmatpush1.bf16.msra.mxu0 0
  %103 = vmatprep.mubr.bf16.mxu0 0
  %104 = vmatmul.mubr.bf16.gmra.mrb[0].mxu0 %v66
  %v105 = vpop.f32.mrb[0].mxu0
  %v106 = vadd.f32 0.0, %v105
  %v107 = vpop.f32.mrb[0].mxu0
  %v108 = vpop.f32.mrb[0].mxu0
  %v109 = vadd.f32 0.0, %v108
  %v110 = vpop.f32.mrb[0].mxu0
  %111 = vmatprep.mubr.bf16.mxu0 0
  %112 = vmatmul.mubr.bf16.gmra.mrb[0].mxu0 %v69
  %v113 = vpop.f32.mrb[0].mxu0
  %v114 = vadd.f32 0.0, %v113
  %v115 = vpop.f32.mrb[0].mxu0
  %v116 = vpop.f32.mrb[0].mxu0
  %v117 = vadd.f32 0.0, %v116
  %v118 = vpop.f32.mrb[0].mxu0
  %119 = vdwg.mxu0
  %v120 = vld [vmem:[%s2] sm:$0xff]
  %v121 = vld [vmem:[%s2 + $0x8] sm:$0xff]
  %v122 = vadd.f32 %v106, %v120
  %v123 = vadd.f32 %v109, %v121
  %v124 = vadd.f32 %v114, %v120
  %v125 = vadd.f32 %v117, %v121
  %v126 = vld [vmem:[%s3] sm:$0x1]
  %vm127 = vcmask 253952
  %128 = vst.msk [vmem:[%s4] sm:$0x1] %vm127, %v126
  %129 = vst.msk [vmem:[%s4 + $0x18] sm:$0x1] %vm127, %v126
  %vm130 = vcmask 261120
  %131 = vst.msk [vmem:[%s4 + $0x1] sm:$0xff] %vm130, %v122
  %132 = vst.msk [vmem:[%s4 + $0x9] sm:$0xff] %vm130, %v123
  %133 = vst.msk [vmem:[%s4 + $0x19] sm:$0xff] %vm130, %v124
  %134 = vst.msk [vmem:[%s4 + $0x21] sm:$0xff] %vm130, %v125
  // Predicated region
  $region18: #{patch_embedding_forward.1} parent=0 // pred_check
    _
  $region19: #{patch_embedding_forward.1} parent=0 // pred_check_branch
    %136 = sbr.rel (0) target = $region21
  $region20: #{patch_embedding_forward.1} parent=0 // pred_region
    _
  $region21: #{patch_embedding_forward.1} parent=0 // pred_fallthru
    _
  // Predicated region
  $region22: #{patch_embedding_forward.1} parent=0 // pred_check
    _
  $region23: #{patch_embedding_forward.1} parent=0 // pred_check_branch
    %138 = sbr.rel (0) target = $region25
  $region24: #{patch_embedding_forward.1} parent=0 // pred_region
    _
  $region25: #{patch_embedding_forward.1} parent=0 // pred_fallthru
    _

</llo_original>
